<compile_context>
chip_gen: v6e
topology: v6e:2x2x1
jax: 0.10.0
libtpu: 0.0.40
codegen_flags: <defaults>
</compile_context>

<pallas_src>
import functools

import jax
import jax.numpy as jnp
from jax.experimental import pallas as pl
from jax.experimental.pallas import tpu as pltpu


def _round_up(x, m):
    return ((x + m - 1) // m) * m


def _largest_tile(dim, candidates):
    for t in candidates:
        if dim % t == 0:
            return t
    return dim


def _linear_kernel(x_ref, w_ref, b_ref, o_ref, acc_ref):
    # x_ref: (tm, tk), w_ref: (tk, tn), b_ref: (1, tn), o_ref: (tm, tn), acc_ref: (tm, tn) f32
    k = pl.program_id(2)

    @pl.when(k == 0)
    def _init():
        # Fold the bias into the accumulator init -> epilogue is a pure cast + store.
        acc_ref[...] = jnp.broadcast_to(
            b_ref[...].astype(jnp.float32), acc_ref.shape
        )

    acc_ref[...] += jnp.dot(
        x_ref[...], w_ref[...], preferred_element_type=jnp.float32
    )

    @pl.when(k == pl.num_programs(2) - 1)
    def _store():
        o_ref[...] = acc_ref[...].astype(o_ref.dtype)


def prepare_linear_params(weight, bias):
    """One-time conversion of PyTorch-layout Linear params to the kernel layout.

    weight: (N, C) -> transposed + zero-padded to (C_pad, N_pad), lane-dense N.
    bias:   (N,)   -> (1, N_pad).
    Hoist this out of the hot path: the transpose/pad then never runs per forward.
    """
    N, C = weight.shape
    C_pad = _round_up(C, 128)
    N_pad = _round_up(N, 128)
    w_t = jnp.zeros((C_pad, N_pad), weight.dtype).at[:C, :N].set(weight.T)
    b2d = jnp.zeros((1, N_pad), bias.dtype).at[0, :N].set(bias)
    return w_t, b2d, N


def mlp_forward_prepared(x, w_t, b2d, *, num_classes):
    """y = x @ W + b with pre-transposed, lane-padded params. Returns (B, num_classes)."""
    B, C = x.shape
    C_pad, N_pad = w_t.shape

    # Tile plan: 128/256-aligned, small enough to double-buffer in 64 MiB VMEM (v7x).
    B_pad = _round_up(B, 8)
    tm = _largest_tile(B_pad, (256, 128, 64, 32, 16, 8))
    tn = _largest_tile(N_pad, (256, 128))
    tk = _largest_tile(C_pad, (512, 256, 128))

    x_p = x
    if B_pad != B or C_pad != C:
        x_p = jnp.pad(x, ((0, B_pad - B), (0, C_pad - C)))

    grid = (B_pad // tm, N_pad // tn, C_pad // tk)

    itemsize = jnp.dtype(x.dtype).itemsize
    vmem_bytes = (
        2 * (tm * tk + tk * tn + tn) * itemsize  # double-buffered inputs
        + 2 * tm * tn * itemsize                 # double-buffered output
        + tm * tn * 4                            # f32 accumulator scratch
    )
    vmem_limit = min(max(2 * vmem_bytes, 32 << 20), 64 << 20)

    cost = pl.CostEstimate(
        flops=2 * B_pad * C_pad * N_pad,
        transcendentals=0,
        bytes_accessed=itemsize
        * (B_pad * C_pad + C_pad * N_pad + N_pad + B_pad * N_pad),
    )

    out = pl.pallas_call(
        _linear_kernel,
        out_shape=jax.ShapeDtypeStruct((B_pad, N_pad), x.dtype),
        grid_spec=pltpu.PrefetchScalarGridSpec(
            num_scalar_prefetch=0,
            grid=grid,
            in_specs=[
                pl.BlockSpec((tm, tk), lambda i, j, k: (i, k)),
                pl.BlockSpec((tk, tn), lambda i, j, k: (k, j)),
                # Bias block index constant across k -> no per-step re-DMA.
                pl.BlockSpec((1, tn), lambda i, j, k: (0, j)),
            ],
            out_specs=pl.BlockSpec((tm, tn), lambda i, j, k: (i, j)),
            scratch_shapes=[pltpu.VMEM((tm, tn), jnp.float32)],
        ),
        compiler_params=pltpu.CompilerParams(
            dimension_semantics=("parallel", "parallel", "arbitrary"),
            vmem_limit_bytes=vmem_limit,
        ),
        cost_estimate=cost,
    )(x_p, w_t, b2d)

    return out[:B, :num_classes]


def mlp_forward(x, weight, bias):
    """PyTorch nn.Linear semantics: y = x @ weight.T + bias.

    Convenience wrapper; in real use call prepare_linear_params() once and reuse.
    """
    w_t, b2d, n_out = prepare_linear_params(weight, bias)
    return mlp_forward_prepared(x, w_t, b2d, num_classes=n_out)


if __name__ == "__main__":
    # Shapes implied by the module: MLP(in_channel=32, num_classes=2)
    batch, in_channel, num_classes = 8, 32, 2

    key = jax.random.PRNGKey(0)
    kx, kw, kb = jax.random.split(key, 3)

    # Deterministic parameter init mimicking PyTorch nn.Linear (uniform +/- 1/sqrt(in)).
    bound = 1.0 / jnp.sqrt(jnp.float32(in_channel))
    weight = jax.random.uniform(kw, (num_classes, in_channel), jnp.float32,
                                minval=-bound, maxval=bound)
    bias = jax.random.uniform(kb, (num_classes,), jnp.float32,
                              minval=-bound, maxval=bound)
    x = jax.random.normal(kx, (batch, in_channel), jnp.float32)

    # Params prepared ONCE (transpose + lane padding hoisted off the forward path).
    w_t, b2d, n_out = prepare_linear_params(weight, bias)
    fwd = jax.jit(functools.partial(mlp_forward_prepared, num_classes=n_out))

    y = jax.block_until_ready(fwd(x, w_t, b2d))

    # Reference check against plain JAX (same as PyTorch nn.Linear forward).
    y_ref = x @ weight.T + bias
    assert y.shape == (batch, num_classes)
    assert jnp.allclose(y, y_ref, atol=1e-5, rtol=1e-5)

    print("KERNEL_OK")
</pallas_src>

<mosaic_0001>
module attributes {stable_mosaic.version = 11 : i64} {
  func.func @_linear_kernel(%arg0: i32, %arg1: i32, %arg2: i32, %arg3: memref<8x128xf32, #tpu.memory_space<vmem>>, %arg4: memref<128x128xf32, #tpu.memory_space<vmem>>, %arg5: memref<1x128xf32, #tpu.memory_space<vmem>>, %arg6: memref<8x128xf32, #tpu.memory_space<vmem>>, %arg7: memref<8x128xf32, #tpu.memory_space<vmem>>) attributes {dimension_semantics = [#tpu.dimension_semantics<parallel>, #tpu.dimension_semantics<parallel>, #tpu.dimension_semantics<arbitrary>], iteration_bounds = array<i64: 1, 1, 1>, scalar_prefetch = 0 : i64, scratch_operands = 1 : i64, tpu.core_type = #tpu.core_type<tc>, window_params = [{transform_indices = @transform_0, window_bounds = array<i64: 8, 128>}, {transform_indices = @transform_1, window_bounds = array<i64: 128, 128>}, {transform_indices = @transform_2, window_bounds = array<i64: 1, 128>}, {transform_indices = @transform_3, window_bounds = array<i64: 8, 128>}]} {
    %c0_i32 = arith.constant 0 : i32
    %0 = arith.cmpi eq, %arg2, %c0_i32 : i32
    %1 = arith.extui %0 : i1 to i32
    %c0_i32_0 = arith.constant 0 : i32
    %2 = arith.cmpi ne, %1, %c0_i32_0 : i32
    scf.if %2 {
      %c0_10 = arith.constant 0 : index
      %c0_11 = arith.constant 0 : index
      %12 = vector.load %arg5[%c0_10, %c0_11] : memref<1x128xf32, #tpu.memory_space<vmem>>, vector<1x128xf32>
      %13 = vector.shape_cast %12 : vector<1x128xf32> to vector<1x128xf32>
      %14 = vector.broadcast %13 : vector<1x128xf32> to vector<8x128xf32>
      %c0_12 = arith.constant 0 : index
      %c0_13 = arith.constant 0 : index
      %15 = vector.load %arg7[%c0_12, %c0_13] : memref<8x128xf32, #tpu.memory_space<vmem>>, vector<8x128xf32>
      tpu.vector_store %arg7[%c0_12, %c0_13], %14 {strides = array<i32>} : memref<8x128xf32, #tpu.memory_space<vmem>>, vector<8x128xf32>,
    } else {
    }
    %c0 = arith.constant 0 : index
    %c0_1 = arith.constant 0 : index
    %3 = vector.load %arg7[%c0, %c0_1] : memref<8x128xf32, #tpu.memory_space<vmem>>, vector<8x128xf32>
    %c0_2 = arith.constant 0 : index
    %c0_3 = arith.constant 0 : index
    %4 = vector.load %arg3[%c0_2, %c0_3] : memref<8x128xf32, #tpu.memory_space<vmem>>, vector<8x128xf32>
    %c0_4 = arith.constant 0 : index
    %c0_5 = arith.constant 0 : index
    %5 = vector.load %arg4[%c0_4, %c0_5] : memref<128x128xf32, #tpu.memory_space<vmem>>, vector<128x128xf32>
    %cst = arith.constant dense<0.000000e+00> : vector<8x128xf32>
    %6 = tpu.matmul %4, %5, %cst {dimension_numbers = #tpu.dot_dimension_numbers<[1], [0], [0], [1], [0, 0, 1, 1], [], []>} : vector<8x128xf32>, vector<128x128xf32>, vector<8x128xf32> -> vector<8x128xf32>
    %7 = arith.addf %3, %6 : vector<8x128xf32>
    %c0_6 = arith.constant 0 : index
    %c0_7 = arith.constant 0 : index
    %8 = vector.load %arg7[%c0_6, %c0_7] : memref<8x128xf32, #tpu.memory_space<vmem>>, vector<8x128xf32>
    tpu.vector_store %arg7[%c0_6, %c0_7], %7 {strides = array<i32>} : memref<8x128xf32, #tpu.memory_space<vmem>>, vector<8x128xf32>,
    %c0_i32_8 = arith.constant 0 : i32
    %9 = arith.cmpi eq, %arg2, %c0_i32_8 : i32
    %10 = arith.extui %9 : i1 to i32
    %c0_i32_9 = arith.constant 0 : i32
    %11 = arith.cmpi ne, %10, %c0_i32_9 : i32
    scf.if %11 {
      %c0_10 = arith.constant 0 : index
      %c0_11 = arith.constant 0 : index
      %12 = vector.load %arg7[%c0_10, %c0_11] : memref<8x128xf32, #tpu.memory_space<vmem>>, vector<8x128xf32>
      %c0_12 = arith.constant 0 : index
      %c0_13 = arith.constant 0 : index
      %13 = vector.load %arg6[%c0_12, %c0_13] : memref<8x128xf32, #tpu.memory_space<vmem>>, vector<8x128xf32>
      tpu.vector_store %arg6[%c0_12, %c0_13], %12 {strides = array<i32>} : memref<8x128xf32, #tpu.memory_space<vmem>>, vector<8x128xf32>,
    } else {
    }
    return
  }
  func.func @transform_0(%arg0: i32, %arg1: i32, %arg2: i32) -> (i32, i32) {
    %c0_i32 = arith.constant 0 : i32
    return %arg0, %arg2 : i32, i32
  }
  func.func @transform_1(%arg0: i32, %arg1: i32, %arg2: i32) -> (i32, i32) {
    %c0_i32 = arith.constant 0 : i32
    return %arg2, %arg1 : i32, i32
  }
  func.func @transform_2(%arg0: i32, %arg1: i32, %arg2: i32) -> (i32, i32) {
    %c0_i32 = arith.constant 0 : i32
    %c0_i32_0 = arith.constant 0 : i32
    return %c0_i32, %arg1 : i32, i32
  }
  func.func @transform_3(%arg0: i32, %arg1: i32, %arg2: i32) -> (i32, i32) {
    %c0_i32 = arith.constant 0 : i32
    return %arg0, %arg1 : i32, i32
  }
}

</mosaic_0001>

<llo_original>
// kernel: mlp_forward_prepared.1
$region0: #{mlp_forward_prepared.1}
  #allocation0 [shape = 'u32[]', space=smem, size = 0x4, offset = 0x4, fixed_abs, tag = 'smem constant byte address 0x4 - core index']
  #allocation1 [shape = 'u32[144,128]{1,0:T(1,128)}', space=vmem, size = 0x12000, scoped, tag = 'internal scratch']
  #allocation2 [shape = 'f32[8,128]{1,0:T(8,128)}', space=vmem, size = 0x1000, scoped, tag = 'scratch operand']
  %s0 = inlined_call_operand.vmem [shape: f32[8,128], index: 0, kind: input, shape index: {}]
  %s1 = inlined_call_operand.hbm [shape: f32[128,128], index: 1, kind: input, shape index: {}]
  %s2 = inlined_call_operand.vmem [shape: f32[1,128], index: 2, kind: input, shape index: {}]
  %s3 = inlined_call_operand.vmem [shape: f32[8,128], index: 3, kind: output, shape index: {}]
  %s4 = sld [smem:[#allocation0]]
  $region34: #{mlp_forward_prepared.1} parent=0
    _
  %s6 = ssub.s32 1, %s4
  %s7 = scalar_select 0, %s6, %s4
  $region1: #{mlp_forward_prepared.1} parent=0
    #allocation3 [shape = 'u8[65536]{0}', space=vmem, size = 0x10000, scoped, tag = 'input window, operand 1, single buffered']
    #allocation4 [shape = 's32[1]{0}', space=sflag, size = 0x4, scoped, tag = 'scoped memory for mlp_forward_prepared.1']
    %8 = vsyncpa [#allocation4], 0
    // Predicated region
    $region2: #{mlp_forward_prepared.1} parent=1 // pred_check
      _
    $region3: #{mlp_forward_prepared.1} parent=1 // pred_check_branch
      %10 = sbr.rel (0) target = $region5
    $region4: #{mlp_forward_prepared.1} parent=1 // pred_region
      _
    $region5: #{mlp_forward_prepared.1} parent=1 // pred_fallthru
      _
    // Predicated region
    $region6: #{mlp_forward_prepared.1} parent=1 // pred_check
      _
    $region7: #{mlp_forward_prepared.1} parent=1 // pred_check_branch
      %12 = sbr.rel (0) target = $region9
    $region8: #{mlp_forward_prepared.1} parent=1 // pred_region
      %s14 = ssub.s32 2048, 2048
      %15 = vsyncadd [#allocation4], %s14
      %s16 = sshll.u32 [#allocation3], 4
      %s17 = int_to_ptr.vmem [resolvable:$true] %s16
      %22 = dma.hbm_to_vmem [thread:$0]  %s1, 2048, %s17, [#allocation4], 128, 128, 8
    $region9: #{mlp_forward_prepared.1} parent=1 // pred_fallthru
      _
    // Predicated region
    $region10: #{mlp_forward_prepared.1} parent=1 // pred_check
      _
    $region11: #{mlp_forward_prepared.1} parent=1 // pred_check_branch
      %24 = sbr.rel (0) target = $region13
    $region12: #{mlp_forward_prepared.1} parent=1 // pred_region
      _
    $region13: #{mlp_forward_prepared.1} parent=1 // pred_fallthru
      _
    // Predicated region
    $region14: #{mlp_forward_prepared.1} parent=1 // pred_check
      _
    $region15: #{mlp_forward_prepared.1} parent=1 // pred_check_branch
      %26 = sbr.rel (0) target = $region17
    $region16: #{mlp_forward_prepared.1} parent=1 // pred_region
      %27 = dma.done [#allocation4], 2048
    $region17: #{mlp_forward_prepared.1} parent=1 // pred_fallthru
      _
    %p28 = scmp.eq.s32.totalorder 0, 0
    // Predicated region
    $region18: #{mlp_forward_prepared.1} parent=1 // pred_check
      %p29 = pneg %p28
    $region19: #{mlp_forward_prepared.1} parent=1 // pred_check_branch
      %31 = sbr.rel (%p29) target = $region21
    $region20: #{mlp_forward_prepared.1} parent=1 // pred_region
      %v32 = vld [vmem:[%s2] sm:$0x1]
      %v34 = vlaneseq
      %v35 = vshrl.u32 %v34, 7
      %v36 = vsub.s32 0, %v35
      %v37 = vrot.slane %v32, %v36
      %39 = vst [vmem:[#allocation2] sm:$0xff] %v37
    $region21: #{mlp_forward_prepared.1} parent=1 // pred_fallthru
      _
    %v40 = vld [vmem:[#allocation2] sm:$0xff]
    %v41 = vld [vmem:[%s0] sm:$0xff]
    %v42 = vld [vmem:[#allocation3] sm:$0xff]
    %v43 = vld [vmem:[#allocation3 + $0x8] sm:$0xff]
    %v44 = vld [vmem:[#allocation3 + $0x10] sm:$0xff]
    %v45 = vld [vmem:[#allocation3 + $0x18] sm:$0xff]
    %v46 = vld [vmem:[#allocation3 + $0x20] sm:$0xff]
    %v47 = vld [vmem:[#allocation3 + $0x28] sm:$0xff]
    %v48 = vld [vmem:[#allocation3 + $0x30] sm:$0xff]
    %v49 = vld [vmem:[#allocation3 + $0x38] sm:$0xff]
    %v50 = vld [vmem:[#allocation3 + $0x40] sm:$0xff]
    %v51 = vld [vmem:[#allocation3 + $0x48] sm:$0xff]
    %v52 = vld [vmem:[#allocation3 + $0x50] sm:$0xff]
    %v53 = vld [vmem:[#allocation3 + $0x58] sm:$0xff]
    %v54 = vld [vmem:[#allocation3 + $0x60] sm:$0xff]
    %v55 = vld [vmem:[#allocation3 + $0x68] sm:$0xff]
    %v56 = vld [vmem:[#allocation3 + $0x70] sm:$0xff]
    %v57 = vld [vmem:[#allocation3 + $0x78] sm:$0xff]
    %58 = vmatprep.subr.mxu0 0.0
    %59 = vmatpush1.msra.mxu0 %v57
    %60 = vmatprep.subr.mxu0 0.0
    %61 = vmatpush1.msra.mxu0 %v56
    %62 = vmatprep.subr.mxu0 0.0
    %63 = vmatpush1.msra.mxu0 %v55
    %64 = vmatprep.subr.mxu0 0.0
    %65 = vmatpush1.msra.mxu0 %v54
    %66 = vmatprep.subr.mxu0 0.0
    %67 = vmatpush1.msra.mxu0 %v53
    %68 = vmatprep.subr.mxu0 0.0
    %69 = vmatpush1.msra.mxu0 %v52
    %70 = vmatprep.subr.mxu0 0.0
    %71 = vmatpush1.msra.mxu0 %v51
    %72 = vmatprep.subr.mxu0 0.0
    %73 = vmatpush1.msra.mxu0 %v50
    %74 = vmatprep.subr.mxu0 0.0
    %75 = vmatpush1.msra.mxu0 %v49
    %76 = vmatprep.subr.mxu0 0.0
    %77 = vmatpush1.msra.mxu0 %v48
    %78 = vmatprep.subr.mxu0 0.0
    %79 = vmatpush1.msra.mxu0 %v47
    %80 = vmatprep.subr.mxu0 0.0
    %81 = vmatpush1.msra.mxu0 %v46
    %82 = vmatprep.subr.mxu0 0.0
    %83 = vmatpush1.msra.mxu0 %v45
    %84 = vmatprep.subr.mxu0 0.0
    %85 = vmatpush1.msra.mxu0 %v44
    %86 = vmatprep.subr.mxu0 0.0
    %87 = vmatpush1.msra.mxu0 %v43
    %88 = vmatprep.subr.mxu0 0.0
    %89 = vmatpush1.msra.mxu0 %v42
    %90 = vmatprep.subr.mxu0 0.0
    %91 = vmatpush2.msra.mxu0 0.0
    %92 = vmatprep.subr.mxu0 0.0
    %93 = vmatpush2.msra.mxu0 0.0
    %94 = vmatprep.subr.mxu0 0.0
    %95 = vmatpush2.msra.mxu0 0.0
    %96 = vmatprep.subr.mxu0 0.0
    %97 = vmatpush2.msra.mxu0 0.0
    %98 = vmatprep.subr.mxu0 0.0
    %99 = vmatpush2.msra.mxu0 0.0
    %100 = vmatprep.subr.mxu0 0.0
    %101 = vmatpush2.msra.mxu0 0.0
    %102 = vmatprep.subr.mxu0 0.0
    %103 = vmatpush2.msra.mxu0 0.0
    %104 = vmatprep.subr.mxu0 0.0
    %105 = vmatpush2.msra.mxu0 0.0
    %106 = vmatprep.subr.mxu0 0.0
    %107 = vmatpush2.msra.mxu0 0.0
    %108 = vmatprep.subr.mxu0 0.0
    %109 = vmatpush2.msra.mxu0 0.0
    %110 = vmatprep.subr.mxu0 0.0
    %111 = vmatpush2.msra.mxu0 0.0
    %112 = vmatprep.subr.mxu0 0.0
    %113 = vmatpush2.msra.mxu0 0.0
    %114 = vmatprep.subr.mxu0 0.0
    %115 = vmatpush2.msra.mxu0 0.0
    %116 = vmatprep.subr.mxu0 0.0
    %117 = vmatpush2.msra.mxu0 0.0
    %118 = vmatprep.subr.mxu0 0.0
    %119 = vmatpush2.msra.mxu0 0.0
    %120 = vmatprep.subr.mxu0 0.0
    %121 = vmatpush2.msra.mxu0 0.0
    %122 = vmatprep.mubr.f32.mxu0 0.0
    %123 = vmatmul.mubr.f32.gmra.mxu0 %v41
    %v124 = vpop.f32.mrf.mxu0
    %v125 = vadd.f32 0.0, %v124
    %v126 = vpop.f32.mrf.mxu0
    %127 = vdwg.mxu0
    %v128 = vadd.f32 %v40, %v125
    %129 = vst [vmem:[#allocation2] sm:$0xff] %v128
    // Predicated region
    $region22: #{mlp_forward_prepared.1} parent=1 // pred_check
      %p130 = pneg %p28
    $region23: #{mlp_forward_prepared.1} parent=1 // pred_check_branch
      %132 = sbr.rel (%p130) target = $region25
    $region24: #{mlp_forward_prepared.1} parent=1 // pred_region
      %v133 = vld [vmem:[#allocation2] sm:$0xff]
      %134 = vst [vmem:[%s3] sm:$0xff] %v133
    $region25: #{mlp_forward_prepared.1} parent=1 // pred_fallthru
      _
    // Predicated region
    $region26: #{mlp_forward_prepared.1} parent=1 // pred_check
      _
    $region27: #{mlp_forward_prepared.1} parent=1 // pred_check_branch
      %136 = sbr.rel (0) target = $region29
    $region28: #{mlp_forward_prepared.1} parent=1 // pred_region
      _
    $region29: #{mlp_forward_prepared.1} parent=1 // pred_fallthru
      _
    // Predicated region
    $region30: #{mlp_forward_prepared.1} parent=1 // pred_check
      _
    $region31: #{mlp_forward_prepared.1} parent=1 // pred_check_branch
      %138 = sbr.rel (0) target = $region33
    $region32: #{mlp_forward_prepared.1} parent=1 // pred_region
      _
    $region33: #{mlp_forward_prepared.1} parent=1 // pred_fallthru
      _
    %139 = vsyncpa [#allocation4], 1

</llo_original>
